<compile_context>
chip_gen: v6e
topology: v6e:2x2x1
jax: 0.10.0
libtpu: 0.0.40
codegen_flags: <defaults>
</compile_context>

<pallas_src>
import jax
import jax.numpy as jnp
from jax.experimental import pallas as pl
from jax.experimental.pallas import tpu as pltpu


def adversarial_kernel(x_ref, w_ref, b_ref, out_ref):
    # x: (TB, D) native dtype, w: (D, C) f32, b: (1, C) f32, out: (TB, C) f32
    x = x_ref[...].astype(jnp.float32)  # matches PyTorch x.to(torch.float32)

    # Fused (Linear ∘ Linear): single MXU push + bias.
    logits = jnp.dot(x, w_ref[...], preferred_element_type=jnp.float32) + b_ref[...]

    # Softmax(dim=1): input is strictly 2-D, so dim=1 is the last (lane) axis.
    m = jnp.max(logits, axis=-1, keepdims=True)
    e = jnp.exp(logits - m)
    s = jnp.sum(e, axis=-1, keepdims=True)
    out_ref[...] = e * pl.reciprocal(s, approx=False)


def adversarial_forward(x, w_in, b_in, w_fc, b_fc, *, tb_max=512):
    """x: (B, dim) in its native dtype (cast to f32 inside the kernel).
    Weights in PyTorch layout: w_in (32, dim), b_in (32,), w_fc (C, 32), b_fc (C,)."""
    B, D = x.shape
    C = w_fc.shape[0]

    # Algebraic fusion of the two bias-only Linear layers (no activation between):
    #   (x @ W1^T + b1) @ W2^T + b2 == x @ (W1^T @ W2^T) + (b1 @ W2^T + b2)
    w1_t = jnp.transpose(w_in).astype(jnp.float32)            # (D, 32)
    w2_t = jnp.transpose(w_fc).astype(jnp.float32)            # (32, C)
    w_fused = jnp.dot(w1_t, w2_t, preferred_element_type=jnp.float32)   # (D, C)
    b_fused = (jnp.dot(b_in.astype(jnp.float32), w2_t)
               + b_fc.astype(jnp.float32)).reshape(1, C)      # (1, C)

    # Batch tile: full batch when small, else a sublane-aligned >=8-row tile.
    tb = min(tb_max, B)
    if tb != B:
        tb = max(8, (tb // 8) * 8)
    grid = (pl.cdiv(B, tb),)

    return pl.pallas_call(
        adversarial_kernel,
        out_shape=jax.ShapeDtypeStruct((B, C), jnp.float32),
        grid=grid,
        in_specs=[
            pl.BlockSpec((tb, D), lambda i: (i, 0)),   # streamed batch tiles of x
            pl.BlockSpec((D, C), lambda i: (0, 0)),    # fused weight, resident
            pl.BlockSpec((1, C), lambda i: (0, 0)),    # fused bias, resident
        ],
        out_specs=pl.BlockSpec((tb, C), lambda i: (i, 0)),
        compiler_params=pltpu.CompilerParams(
            dimension_semantics=("parallel",)),        # 2-TC sharding on v7x
    )(x, w_fused, b_fused)


def adversarial_reference(x, w_in, b_in, w_fc, b_fc):
    """Pure-JAX reference mirroring the PyTorch module exactly (unfused)."""
    x = x.astype(jnp.float32)
    out = x @ w_in.T.astype(jnp.float32) + b_in.astype(jnp.float32)
    out = out @ w_fc.T.astype(jnp.float32) + b_fc.astype(jnp.float32)
    return jax.nn.softmax(out, axis=1)


if __name__ == "__main__":
    B, D = 2, 16        # batch, input dim
    H = 32              # hidden size fixed by the module (Linear(dim, 32))
    C = 2               # num_class

    key = jax.random.PRNGKey(0)
    ks = jax.random.split(key, 6)

    x = jax.random.normal(ks[0], (B, D), dtype=jnp.float32)
    # PyTorch Linear default init scale: U(-1/sqrt(fan_in), 1/sqrt(fan_in))
    b_in_scale = 1.0 / jnp.sqrt(D)
    b_fc_scale = 1.0 / jnp.sqrt(H)
    w_in = jax.random.uniform(ks[1], (H, D), minval=-b_in_scale, maxval=b_in_scale)
    b_in = jax.random.uniform(ks[2], (H,), minval=-b_in_scale, maxval=b_in_scale)
    w_fc = jax.random.uniform(ks[3], (C, H), minval=-b_fc_scale, maxval=b_fc_scale)
    b_fc = jax.random.uniform(ks[4], (C,), minval=-b_fc_scale, maxval=b_fc_scale)

    out = adversarial_forward(x, w_in, b_in, w_fc, b_fc)
    out = jax.block_until_ready(out)

    ref = jax.block_until_ready(
        adversarial_reference(x, w_in, b_in, w_fc, b_fc))

    assert out.shape == (B, C), out.shape
    assert bool(jnp.all(jnp.isfinite(out)))
    # rows of a softmax sum to 1
    assert jnp.allclose(jnp.sum(out, axis=1), 1.0, atol=1e-5)
    assert jnp.allclose(out, ref, atol=1e-5, rtol=1e-5), \
        float(jnp.max(jnp.abs(out - ref)))

    print("KERNEL_OK")
</pallas_src>

<mosaic_0001>
module attributes {stable_mosaic.version = 11 : i64} {
  func.func @adversarial_kernel(%arg0: i32, %arg1: memref<2x16xf32, #tpu.memory_space<vmem>>, %arg2: memref<16x2xf32, #tpu.memory_space<vmem>>, %arg3: memref<1x2xf32, #tpu.memory_space<vmem>>, %arg4: memref<2x2xf32, #tpu.memory_space<vmem>>) attributes {dimension_semantics = [#tpu.dimension_semantics<parallel>], iteration_bounds = array<i64: 1>, scalar_prefetch = 0 : i64, scratch_operands = 0 : i64, tpu.core_type = #tpu.core_type<tc>, window_params = [{transform_indices = @transform_0, window_bounds = array<i64: 2, 16>}, {pipeline_mode = #tpu.pipeline_mode<synchronous>, transform_indices = @transform_1, window_bounds = array<i64: 16, 2>}, {pipeline_mode = #tpu.pipeline_mode<synchronous>, transform_indices = @transform_2, window_bounds = array<i64: 1, 2>}, {transform_indices = @transform_3, window_bounds = array<i64: 2, 2>}]} {
    %c0 = arith.constant 0 : index
    %c0_0 = arith.constant 0 : index
    %0 = vector.load %arg1[%c0, %c0_0] : memref<2x16xf32, #tpu.memory_space<vmem>>, vector<2x16xf32>
    %c0_1 = arith.constant 0 : index
    %c0_2 = arith.constant 0 : index
    %1 = vector.load %arg2[%c0_1, %c0_2] : memref<16x2xf32, #tpu.memory_space<vmem>>, vector<16x2xf32>
    %cst = arith.constant dense<0.000000e+00> : vector<2x2xf32>
    %2 = tpu.matmul %0, %1, %cst {dimension_numbers = #tpu.dot_dimension_numbers<[1], [0], [0], [1], [0, 0, 1, 1], [], []>} : vector<2x16xf32>, vector<16x2xf32>, vector<2x2xf32> -> vector<2x2xf32>
    %c0_3 = arith.constant 0 : index
    %c0_4 = arith.constant 0 : index
    %3 = vector.load %arg3[%c0_3, %c0_4] : memref<1x2xf32, #tpu.memory_space<vmem>>, vector<1x2xf32>
    %4 = vector.broadcast %3 : vector<1x2xf32> to vector<2x2xf32>
    %5 = arith.addf %2, %4 : vector<2x2xf32>
    %cst_5 = arith.constant dense<0xFF800000> : vector<2xf32>
    %6 = vector.multi_reduction <maximumf>, %5, %cst_5 [1] : vector<2x2xf32> to vector<2xf32>
    %7 = vector.shape_cast %6 : vector<2xf32> to vector<2x1xf32>
    %8 = vector.broadcast %7 : vector<2x1xf32> to vector<2x2xf32>
    %9 = arith.subf %5, %8 : vector<2x2xf32>
    %10 = math.exp %9 : vector<2x2xf32>
    %cst_6 = arith.constant dense<0.000000e+00> : vector<2xf32>
    %11 = vector.multi_reduction <add>, %10, %cst_6 [1] : vector<2x2xf32> to vector<2xf32>
    %12 = vector.shape_cast %11 : vector<2xf32> to vector<2x1xf32>
    %13 = tpu.reciprocal %12 : vector<2x1xf32> -> vector<2x1xf32>
    %14 = vector.broadcast %13 : vector<2x1xf32> to vector<2x2xf32>
    %15 = arith.mulf %10, %14 : vector<2x2xf32>
    %c0_7 = arith.constant 0 : index
    %c0_8 = arith.constant 0 : index
    %16 = vector.load %arg4[%c0_7, %c0_8] : memref<2x2xf32, #tpu.memory_space<vmem>>, vector<2x2xf32>
    tpu.vector_store %arg4[%c0_7, %c0_8], %15 {strides = array<i32>} : memref<2x2xf32, #tpu.memory_space<vmem>>, vector<2x2xf32>,
    return
  }
  func.func @transform_0(%arg0: i32) -> (i32, i32) {
    %c0_i32 = arith.constant 0 : i32
    %c0_i32_0 = arith.constant 0 : i32
    return %arg0, %c0_i32 : i32, i32
  }
  func.func @transform_1(%arg0: i32) -> (i32, i32) {
    %c0_i32 = arith.constant 0 : i32
    %c0_i32_0 = arith.constant 0 : i32
    %c0_i32_1 = arith.constant 0 : i32
    return %c0_i32, %c0_i32_0 : i32, i32
  }
  func.func @transform_2(%arg0: i32) -> (i32, i32) {
    %c0_i32 = arith.constant 0 : i32
    %c0_i32_0 = arith.constant 0 : i32
    %c0_i32_1 = arith.constant 0 : i32
    return %c0_i32, %c0_i32_0 : i32, i32
  }
  func.func @transform_3(%arg0: i32) -> (i32, i32) {
    %c0_i32 = arith.constant 0 : i32
    %c0_i32_0 = arith.constant 0 : i32
    return %arg0, %c0_i32 : i32, i32
  }
}

</mosaic_0001>

<llo_original>
// kernel: tpu_custom_call.1
$region0: #{tpu_custom_call.1}
  #allocation0 [shape = 'u32[]', space=smem, size = 0x4, offset = 0x4, fixed_abs, tag = 'smem constant byte address 0x4 - core index']
  #allocation1 [shape = 'u32[144,128]{1,0:T(1,128)}', space=vmem, size = 0x12000, scoped, tag = 'internal scratch']
  %s0 = inlined_call_operand.vmem [shape: f32[2,16], index: 0, kind: input, shape index: {}]
  %s1 = inlined_call_operand.vmem [shape: f32[16,2], index: 1, kind: input, shape index: {}]
  %s2 = inlined_call_operand.vmem [shape: f32[1,2], index: 2, kind: input, shape index: {}]
  %s3 = inlined_call_operand.hbm [shape: f32[2,2], index: 3, kind: output, shape index: {}]
  %s4 = sld [smem:[#allocation0]]
  $region22: #{tpu_custom_call.1} parent=0
    _
  %s6 = ssub.s32 1, %s4
  %s7 = scalar_select 0, %s6, %s4
  $region1: #{tpu_custom_call.1} parent=0
    #allocation2 [shape = 'u8[1024]{0}', space=vmem, size = 0x400, scoped, tag = 'output window, operand 0, single buffered']
    #allocation3 [shape = 's32[1]{0}', space=sflag, size = 0x4, scoped, tag = 'scoped memory for tpu_custom_call.1']
    %8 = vsyncpa [#allocation3], 0
    // Predicated region
    $region2: #{tpu_custom_call.1} parent=1 // pred_check
      _
    $region3: #{tpu_custom_call.1} parent=1 // pred_check_branch
      %10 = sbr.rel (0) target = $region5
    $region4: #{tpu_custom_call.1} parent=1 // pred_region
      _
    $region5: #{tpu_custom_call.1} parent=1 // pred_fallthru
      _
    // Predicated region
    $region6: #{tpu_custom_call.1} parent=1 // pred_check
      _
    $region7: #{tpu_custom_call.1} parent=1 // pred_check_branch
      %12 = sbr.rel (0) target = $region9
    $region8: #{tpu_custom_call.1} parent=1 // pred_region
      _
    $region9: #{tpu_custom_call.1} parent=1 // pred_fallthru
      _
    // Predicated region
    $region10: #{tpu_custom_call.1} parent=1 // pred_check
      _
    $region11: #{tpu_custom_call.1} parent=1 // pred_check_branch
      %14 = sbr.rel (0) target = $region13
    $region12: #{tpu_custom_call.1} parent=1 // pred_region
      _
    $region13: #{tpu_custom_call.1} parent=1 // pred_fallthru
      _
    %v15 = vld [vmem:[%s0] sm:$0x3]
    %v16 = vld [vmem:[%s1] sm:$0xff]
    %v17 = vld [vmem:[%s1 + $0x8] sm:$0xff]
    %v18 = vld [vmem:[%s2] sm:$0x1]
    %v20 = vlaneseq
    %v21 = vshrl.u32 %v20, 7
    %v22 = vsub.s32 0, %v21
    %v23 = vrot.slane %v18, %v22
    %vm25 = vcmask 130048
    %v27 = vsel %vm25, %v15, 0
    %29 = vmatprep.subr.mxu0 0.0
    %30 = vmatpush1.msra.mxu0 0.0
    %31 = vmatprep.subr.mxu0 0.0
    %32 = vmatpush1.msra.mxu0 0.0
    %33 = vmatprep.subr.mxu0 0.0
    %34 = vmatpush1.msra.mxu0 0.0
    %35 = vmatprep.subr.mxu0 0.0
    %36 = vmatpush1.msra.mxu0 0.0
    %37 = vmatprep.subr.mxu0 0.0
    %38 = vmatpush1.msra.mxu0 0.0
    %39 = vmatprep.subr.mxu0 0.0
    %40 = vmatpush1.msra.mxu0 0.0
    %41 = vmatprep.subr.mxu0 0.0
    %42 = vmatpush1.msra.mxu0 0.0
    %43 = vmatprep.subr.mxu0 0.0
    %44 = vmatpush1.msra.mxu0 0.0
    %45 = vmatprep.subr.mxu0 0.0
    %46 = vmatpush1.msra.mxu0 0.0
    %47 = vmatprep.subr.mxu0 0.0
    %48 = vmatpush1.msra.mxu0 0.0
    %49 = vmatprep.subr.mxu0 0.0
    %50 = vmatpush1.msra.mxu0 0.0
    %51 = vmatprep.subr.mxu0 0.0
    %52 = vmatpush1.msra.mxu0 0.0
    %53 = vmatprep.subr.mxu0 0.0
    %54 = vmatpush1.msra.mxu0 0.0
    %55 = vmatprep.subr.mxu0 0.0
    %56 = vmatpush1.msra.mxu0 0.0
    %57 = vmatprep.subr.mxu0 0.0
    %58 = vmatpush1.msra.mxu0 %v17
    %59 = vmatprep.subr.mxu0 0.0
    %60 = vmatpush1.msra.mxu0 %v16
    %61 = vmatprep.subr.mxu0 0.0
    %62 = vmatpush2.msra.mxu0 0.0
    %63 = vmatprep.subr.mxu0 0.0
    %64 = vmatpush2.msra.mxu0 0.0
    %65 = vmatprep.subr.mxu0 0.0
    %66 = vmatpush2.msra.mxu0 0.0
    %67 = vmatprep.subr.mxu0 0.0
    %68 = vmatpush2.msra.mxu0 0.0
    %69 = vmatprep.subr.mxu0 0.0
    %70 = vmatpush2.msra.mxu0 0.0
    %71 = vmatprep.subr.mxu0 0.0
    %72 = vmatpush2.msra.mxu0 0.0
    %73 = vmatprep.subr.mxu0 0.0
    %74 = vmatpush2.msra.mxu0 0.0
    %75 = vmatprep.subr.mxu0 0.0
    %76 = vmatpush2.msra.mxu0 0.0
    %77 = vmatprep.subr.mxu0 0.0
    %78 = vmatpush2.msra.mxu0 0.0
    %79 = vmatprep.subr.mxu0 0.0
    %80 = vmatpush2.msra.mxu0 0.0
    %81 = vmatprep.subr.mxu0 0.0
    %82 = vmatpush2.msra.mxu0 0.0
    %83 = vmatprep.subr.mxu0 0.0
    %84 = vmatpush2.msra.mxu0 0.0
    %85 = vmatprep.subr.mxu0 0.0
    %86 = vmatpush2.msra.mxu0 0.0
    %87 = vmatprep.subr.mxu0 0.0
    %88 = vmatpush2.msra.mxu0 0.0
    %89 = vmatprep.subr.mxu0 0.0
    %90 = vmatpush2.msra.mxu0 0.0
    %91 = vmatprep.subr.mxu0 0.0
    %92 = vmatpush2.msra.mxu0 0.0
    %93 = vmatprep.mubr.f32.mxu0 0.0
    %94 = vmatmul.mubr.f32.gmra.mxu0 %v27
    %v95 = vpop.f32.mrf.mxu0
    %v96 = vadd.f32 %v23, %v95
    %v97 = vpop.f32.mrf.mxu0
    %98 = vdwg.mxu0
    %vm99 = vcmask 9216
    %v100 = vsel %vm99, %v96, -inf
    %101 = vmax.xlane.f32.xlu0 %v100
    %v102 = vpop.xlane.xlu0 %101
    %v103 = vsub.f32 %v96, %v102
    %v104 = vmul.f32 %v103, 1.442695
    %v105 = vpow.pop %v104
    %v106 = vsel %vm99, %v105, 0.0
    %107 = vadd.xlane.f32.xlu0 %v106
    %v108 = vpop.xlane.xlu0 %107
    %v109 = vrcp.pop %v108
    %v110 = vmul.f32 %v105, %v109
    %111 = vst.msk [vmem:[#allocation2] sm:$0x3] %vm99, %v110
    // Predicated region
    $region14: #{tpu_custom_call.1} parent=1 // pred_check
      _
    $region15: #{tpu_custom_call.1} parent=1 // pred_check_branch
      %113 = sbr.rel (0) target = $region17
    $region16: #{tpu_custom_call.1} parent=1 // pred_region
      %s115 = ssub.s32 32, 32
      %116 = vsyncadd [#allocation3], %s115
      %s118 = sshll.u32 [#allocation2], 4
      %s119 = int_to_ptr.vmem [resolvable:$true] %s118
      %121 = dma.vmem_to_hbm [thread:$0]  %s119, 32, %s3, [#allocation3]
    $region17: #{tpu_custom_call.1} parent=1 // pred_fallthru
      _
    // Predicated region
    $region18: #{tpu_custom_call.1} parent=1 // pred_check
      _
    $region19: #{tpu_custom_call.1} parent=1 // pred_check_branch
      %123 = sbr.rel (0) target = $region21
    $region20: #{tpu_custom_call.1} parent=1 // pred_region
      %124 = dma.done [#allocation3], 32
    $region21: #{tpu_custom_call.1} parent=1 // pred_fallthru
      _
    %125 = vsyncpa [#allocation3], 1

</llo_original>
